<compile_context>
chip_gen: v6e
topology: v6e:2x2x1
jax: 0.10.0
libtpu: 0.0.40
codegen_flags: <defaults>
</compile_context>

<pallas_src>
import numpy as np
import jax
import jax.numpy as jnp
from jax.experimental import pallas as pl
from jax.experimental.pallas import tpu as pltpu

# Per-batch fused-slab VMEM budget (in + out, double buffered, + weights).
# Conservative so it fits the scoped-VMEM limits of v5e/v6e/v7x with headroom.
_FUSED_VMEM_BUDGET = 24 << 20


# ----------------------------- tiling helpers -----------------------------

def _pick_col_tile(L, target):
    """Largest multiple of 128 that divides L and is <= target, else full L."""
    if L <= target:
        return L
    t = target - (target % 128)
    while t >= 128:
        if L % t == 0:
            return t
        t -= 128
    return L


def _pick_row_tile(M, target):
    """Sublane-aligned row tile; prefer >= 2 row steps (v7x megacore)."""
    rt = min(target, M)
    if rt == M and M >= 16:
        rt = max(8, ((M // 2) // 8) * 8)      # guarantee n_r >= 2
    elif rt < M:
        rt = max(8, (rt // 8) * 8)
    return rt


# ----------------------------- fused kernel (main path) -----------------------------

def _se_fused(params, x3d, vmem_need):
    """grid=(B,): pool + FC gate + scale on a VMEM-resident per-batch slab."""
    B, C, HW = x3d.shape
    w1, w2 = params['w1'], params['w2']        # torch layout: (Cr, C), (C, Cr)
    Cr = w1.shape[0]
    inv_hw = 1.0 / float(HW)

    def kernel(x_ref, w1_ref, w2_ref, o_ref):
        xf = x_ref[0].astype(jnp.float32)                        # (C, HW)
        # Global average pool -> per-channel means as a COLUMN vector (C, 1).
        y = jnp.sum(xf, axis=-1, keepdims=True) * inv_hw
        # Column-form FC chain (== row-form y @ W1.T @ W2.T), f32 on the MXU.
        h = jnp.maximum(
            jnp.dot(w1_ref[...], y, preferred_element_type=jnp.float32), 0.0)  # (Cr, 1)
        s = jax.nn.sigmoid(
            jnp.dot(w2_ref[...], h, preferred_element_type=jnp.float32))       # (C, 1)
        # Scale the still-resident slab; cast back to the I/O dtype on store.
        o_ref[0] = (xf * s).astype(o_ref.dtype)

    cp = dict(dimension_semantics=("parallel",))
    if vmem_need > (16 << 20):                 # raise scoped VMEM only if needed
        cp["vmem_limit_bytes"] = int(vmem_need) + (2 << 20)

    itemsize = x3d.dtype.itemsize
    cost = pl.CostEstimate(
        flops=2 * B * C * HW + 4 * B * C * Cr,
        transcendentals=B * C,
        bytes_accessed=2 * B * C * HW * itemsize + 2 * 4 * (w1.size + w2.size))

    return pl.pallas_call(
        kernel,
        out_shape=jax.ShapeDtypeStruct((B, C, HW), x3d.dtype),
        grid=(B,),
        in_specs=[pl.BlockSpec((1, C, HW), lambda b: (b, 0, 0)),
                  pl.BlockSpec((Cr, C), lambda b: (0, 0)),
                  pl.BlockSpec((C, Cr), lambda b: (0, 0))],
        out_specs=pl.BlockSpec((1, C, HW), lambda b: (b, 0, 0)),
        compiler_params=pltpu.CompilerParams(**cp),
        cost_estimate=cost,
    )(x3d, w1, w2)


# ----------------------------- streaming kernels (big-slab fallback) -----------------------------

def _row_mean(x2d, *, row_tile=512, col_tile_target=2048):
    """Mean over the last axis of x2d (M, L) -> (M, 1), f32 accumulation."""
    M, L = x2d.shape
    rt = _pick_row_tile(M, row_tile)
    lt = _pick_col_tile(L, col_tile_target)
    n_r = pl.cdiv(M, rt)
    n_c = L // lt
    inv_l = 1.0 / float(L)

    def kernel(x_ref, o_ref):
        j = pl.program_id(1)

        @pl.when(j == 0)
        def _():
            o_ref[...] = jnp.zeros_like(o_ref)

        o_ref[...] += jnp.sum(x_ref[...].astype(jnp.float32), axis=-1,
                              keepdims=True)

        @pl.when(j == n_c - 1)
        def _():
            o_ref[...] *= inv_l

    itemsize = x2d.dtype.itemsize
    return pl.pallas_call(
        kernel,
        out_shape=jax.ShapeDtypeStruct((M, 1), jnp.float32),
        grid=(n_r, n_c),
        in_specs=[pl.BlockSpec((rt, lt), lambda i, j: (i, j))],
        out_specs=pl.BlockSpec((rt, 1), lambda i, j: (i, 0)),
        compiler_params=pltpu.CompilerParams(
            dimension_semantics=("parallel", "arbitrary"),
            vmem_limit_bytes=2 * rt * lt * itemsize + (4 << 20)),
        cost_estimate=pl.CostEstimate(flops=M * L, transcendentals=0,
                                      bytes_accessed=M * L * itemsize + 4 * M),
    )(x2d)


def _row_scale(x2d, s_col, *, row_tile=512, col_tile_target=1024):
    """out[r, :] = x2d[r, :] * s_col[r, 0], tiled + fully parallel."""
    M, L = x2d.shape
    rt = _pick_row_tile(M, row_tile)
    lt = _pick_col_tile(L, col_tile_target)
    n_r = pl.cdiv(M, rt)
    n_c = L // lt

    def kernel(x_ref, s_ref, o_ref):
        o_ref[...] = (x_ref[...].astype(jnp.float32) * s_ref[...]).astype(o_ref.dtype)

    itemsize = x2d.dtype.itemsize
    return pl.pallas_call(
        kernel,
        out_shape=jax.ShapeDtypeStruct((M, L), x2d.dtype),
        grid=(n_r, n_c),
        in_specs=[pl.BlockSpec((rt, lt), lambda i, j: (i, j)),
                  pl.BlockSpec((rt, 1), lambda i, j: (i, 0))],
        out_specs=pl.BlockSpec((rt, lt), lambda i, j: (i, j)),
        compiler_params=pltpu.CompilerParams(
            dimension_semantics=("parallel", "parallel"),
            vmem_limit_bytes=4 * rt * lt * itemsize + (4 << 20)),
        cost_estimate=pl.CostEstimate(flops=M * L, transcendentals=0,
                                      bytes_accessed=2 * M * L * itemsize + 4 * M),
    )(x2d, s_col)


def _se_unfused(params, x3d):
    B, C, HW = x3d.shape
    x2d = x3d.reshape(B * C, HW)
    y = _row_mean(x2d).reshape(B, C)                      # one pass over x
    # The (B, C) gate is a few KB -> plain XLA is fine on this fallback path.
    h = jax.nn.relu(y @ params['w1'].T)
    s = jax.nn.sigmoid(h @ params['w2'].T)
    out2d = _row_scale(x2d, s.reshape(B * C, 1))          # second pass + write
    return out2d.reshape(B, C, HW)


# ----------------------------- parameters -----------------------------

def init_params(key, channel, reduction=3):
    """Matches torch.nn.Linear default init (kaiming_uniform, a=sqrt(5), no bias).

    Weights keep the torch layout:
      w1 = fc[0].weight : (C//r, C)
      w2 = fc[2].weight : (C, C//r)
    """
    cr = channel // reduction
    k1, k2 = jax.random.split(key)
    b1 = 1.0 / np.sqrt(channel)     # fan_in of fc[0] is C
    b2 = 1.0 / np.sqrt(cr)          # fan_in of fc[2] is C//r
    return {
        'w1': jax.random.uniform(k1, (cr, channel), jnp.float32, -b1, b1),
        'w2': jax.random.uniform(k2, (channel, cr), jnp.float32, -b2, b2),
    }


# ----------------------------- forward pass -----------------------------

def se_layer_forward(params, x, *, force_unfused=False):
    B, C, H, W = x.shape
    HW = H * W
    x3d = x.reshape(B, C, HW)                      # free reshape (NCHW layout)

    itemsize = x.dtype.itemsize
    slab = C * HW * itemsize                        # one batch's activation
    w_bytes = 4 * (params['w1'].size + params['w2'].size)
    vmem_need = 4 * slab + 2 * w_bytes + (1 << 20)  # in+out double-buffered

    if (not force_unfused) and vmem_need <= _FUSED_VMEM_BUDGET:
        out3d = _se_fused(params, x3d, vmem_need)   # 1R + 1W, single launch
    else:
        out3d = _se_unfused(params, x3d)            # streaming 2-kernel path
    return out3d.reshape(B, C, H, W)


# ----------------------------- pure-JAX reference -----------------------------

def se_layer_reference(params, x):
    xf = x.astype(jnp.float32)
    y = jnp.mean(xf, axis=(2, 3))                          # (B, C)
    h = jax.nn.relu(y @ params['w1'].T)
    s = jax.nn.sigmoid(h @ params['w2'].T)
    return xf * s[:, :, None, None]


# ----------------------------- main -----------------------------

if __name__ == "__main__":
    key = jax.random.PRNGKey(0)
    k_x, k_p = jax.random.split(key)

    B, C, H, W = 2, 64, 32, 32      # channel=64, reduction=3 -> hidden 21
    reduction = 3

    x = jax.random.normal(k_x, (B, C, H, W), jnp.float32)
    params = init_params(k_p, C, reduction)
    ref = np.asarray(se_layer_reference(params, x))

    # 1) fused single-kernel path (default)
    out = jax.block_until_ready(se_layer_forward(params, x))
    assert out.shape == (B, C, H, W), out.shape
    np.testing.assert_allclose(np.asarray(out), ref, atol=1e-3, rtol=1e-3)

    # 2) big-slab streaming fallback path (forced, same small input)
    out_fb = jax.block_until_ready(se_layer_forward(params, x, force_unfused=True))
    np.testing.assert_allclose(np.asarray(out_fb), ref, atol=1e-3, rtol=1e-3)

    # 3) bf16 I/O path (memory-bound layer -> ~2x from halving bytes)
    xb = x.astype(jnp.bfloat16)
    out_bf = jax.block_until_ready(se_layer_forward(params, xb))
    ref_bf = np.asarray(
        se_layer_reference(params, xb).astype(jnp.bfloat16).astype(jnp.float32))
    np.testing.assert_allclose(np.asarray(out_bf.astype(jnp.float32)), ref_bf,
                               atol=5e-2, rtol=5e-2)

    print("KERNEL_OK")
</pallas_src>

<mosaic_0001>
module attributes {stable_mosaic.version = 11 : i64} {
  func.func @kernel(%arg0: i32, %arg1: memref<1x64x1024xf32, #tpu.memory_space<vmem>>, %arg2: memref<21x64xf32, #tpu.memory_space<vmem>>, %arg3: memref<64x21xf32, #tpu.memory_space<vmem>>, %arg4: memref<1x64x1024xf32, #tpu.memory_space<vmem>>) attributes {dimension_semantics = [#tpu.dimension_semantics<parallel>], iteration_bounds = array<i64: 2>, scalar_prefetch = 0 : i64, scratch_operands = 0 : i64, tpu.core_type = #tpu.core_type<tc>, window_params = [{transform_indices = @transform_0, window_bounds = array<i64: 1, 64, 1024>}, {pipeline_mode = #tpu.pipeline_mode<synchronous>, transform_indices = @transform_1, window_bounds = array<i64: 21, 64>}, {pipeline_mode = #tpu.pipeline_mode<synchronous>, transform_indices = @transform_2, window_bounds = array<i64: 64, 21>}, {transform_indices = @transform_3, window_bounds = array<i64: 1, 64, 1024>}]} {
    %c0 = arith.constant 0 : index
    %c0_0 = arith.constant 0 : index
    %c0_1 = arith.constant 0 : index
    %0 = vector.load %arg1[%c0, %c0_0, %c0_1] : memref<1x64x1024xf32, #tpu.memory_space<vmem>>, vector<1x64x1024xf32>
    %1 = vector.shape_cast %0 : vector<1x64x1024xf32> to vector<64x1024xf32>
    %cst = arith.constant dense<0.000000e+00> : vector<64xf32>
    %2 = vector.multi_reduction <add>, %1, %cst [1] : vector<64x1024xf32> to vector<64xf32>
    %3 = vector.shape_cast %2 : vector<64xf32> to vector<64x1xf32>
    %cst_2 = arith.constant 9.765625E-4 : f32
    %4 = vector.broadcast %cst_2 : f32 to vector<64x1xf32>
    %5 = arith.mulf %3, %4 : vector<64x1xf32>
    %c0_3 = arith.constant 0 : index
    %c0_4 = arith.constant 0 : index
    %6 = vector.load %arg2[%c0_3, %c0_4] : memref<21x64xf32, #tpu.memory_space<vmem>>, vector<21x64xf32>
    %cst_5 = arith.constant dense<0.000000e+00> : vector<21x1xf32>
    %7 = tpu.matmul %6, %5, %cst_5 {dimension_numbers = #tpu.dot_dimension_numbers<[1], [0], [0], [1], [0, 0, 1, 1], [], []>} : vector<21x64xf32>, vector<64x1xf32>, vector<21x1xf32> -> vector<21x1xf32>
    %cst_6 = arith.constant 0.000000e+00 : f32
    %8 = vector.broadcast %cst_6 : f32 to vector<21x1xf32>
    %9 = arith.maximumf %7, %8 : vector<21x1xf32>
    %c0_7 = arith.constant 0 : index
    %c0_8 = arith.constant 0 : index
    %10 = vector.load %arg3[%c0_7, %c0_8] : memref<64x21xf32, #tpu.memory_space<vmem>>, vector<64x21xf32>
    %cst_9 = arith.constant dense<0.000000e+00> : vector<64x1xf32>
    %11 = tpu.matmul %10, %9, %cst_9 {dimension_numbers = #tpu.dot_dimension_numbers<[1], [0], [0], [1], [0, 0, 1, 1], [], []>} : vector<64x21xf32>, vector<21x1xf32>, vector<64x1xf32> -> vector<64x1xf32>
    %12 = arith.negf %11 : vector<64x1xf32>
    %13 = math.exp %12 : vector<64x1xf32>
    %cst_10 = arith.constant 1.000000e+00 : f32
    %14 = vector.broadcast %cst_10 : f32 to vector<64x1xf32>
    %15 = arith.addf %14, %13 : vector<64x1xf32>
    %16 = arith.divf %14, %15 : vector<64x1xf32>
    %17 = vector.broadcast %16 : vector<64x1xf32> to vector<64x1024xf32>
    %18 = arith.mulf %1, %17 : vector<64x1024xf32>
    %c0_11 = arith.constant 0 : index
    %c0_12 = arith.constant 0 : index
    %c0_13 = arith.constant 0 : index
    %19 = vector.load %arg4[%c0_11, %c0_12, %c0_13] : memref<1x64x1024xf32, #tpu.memory_space<vmem>>, vector<1x64x1024xf32>
    %20 = vector.shape_cast %19 : vector<1x64x1024xf32> to vector<64x1024xf32>
    %21 = vector.shape_cast %18 : vector<64x1024xf32> to vector<1x64x1024xf32>
    tpu.vector_store %arg4[%c0_11, %c0_12, %c0_13], %21 {strides = array<i32>} : memref<1x64x1024xf32, #tpu.memory_space<vmem>>, vector<1x64x1024xf32>,
    return
  }
  func.func @transform_0(%arg0: i32) -> (i32, i32, i32) {
    %c0_i32 = arith.constant 0 : i32
    %c0_i32_0 = arith.constant 0 : i32
    %c0_i32_1 = arith.constant 0 : i32
    return %arg0, %c0_i32, %c0_i32_0 : i32, i32, i32
  }
  func.func @transform_1(%arg0: i32) -> (i32, i32) {
    %c0_i32 = arith.constant 0 : i32
    %c0_i32_0 = arith.constant 0 : i32
    %c0_i32_1 = arith.constant 0 : i32
    return %c0_i32, %c0_i32_0 : i32, i32
  }
  func.func @transform_2(%arg0: i32) -> (i32, i32) {
    %c0_i32 = arith.constant 0 : i32
    %c0_i32_0 = arith.constant 0 : i32
    %c0_i32_1 = arith.constant 0 : i32
    return %c0_i32, %c0_i32_0 : i32, i32
  }
  func.func @transform_3(%arg0: i32) -> (i32, i32, i32) {
    %c0_i32 = arith.constant 0 : i32
    %c0_i32_0 = arith.constant 0 : i32
    %c0_i32_1 = arith.constant 0 : i32
    return %arg0, %c0_i32, %c0_i32_0 : i32, i32, i32
  }
}

</mosaic_0001>

<llo_original>
// kernel: tpu_custom_call.1
$region0: #{tpu_custom_call.1}
  #allocation0 [shape = 'u32[]', space=smem, size = 0x4, offset = 0x4, fixed_abs, tag = 'smem constant byte address 0x4 - core index']
  #allocation1 [shape = 'u32[144,128]{1,0:T(1,128)}', space=vmem, size = 0x12000, scoped, tag = 'internal scratch']
  %s0 = inlined_call_operand.hbm [shape: f32[2,64,1024], index: 0, kind: input, shape index: {}]
  %s1 = inlined_call_operand.vmem [shape: f32[21,64], index: 1, kind: input, shape index: {}]
  %s2 = inlined_call_operand.vmem [shape: f32[64,21], index: 2, kind: input, shape index: {}]
  %s3 = inlined_call_operand.hbm [shape: f32[2,64,1024], index: 3, kind: output, shape index: {}]
  %s4 = sld [smem:[#allocation0]]
  $region49: #{tpu_custom_call.1} parent=0
    _
  %s6 = ssub.s32 1, %s4
  %s7 = scalar_select 0, %s6, %s4
  $region1: #{tpu_custom_call.1} parent=0
    #allocation2 [shape = 'u8[524288]{0}', space=vmem, size = 0x80000, scoped, tag = 'input window, operand 0']
    #allocation3 [shape = 's32[2]{0}', space=sflag, size = 0x8, scoped, tag = 'scoped memory for tpu_custom_call.1']
    #allocation4 [shape = 's32[2]{0}', space=sflag, size = 0x8, scoped, tag = 'scoped memory for tpu_custom_call.1']
    #allocation5 [shape = 'u8[524288]{0}', space=vmem, size = 0x80000, scoped, tag = 'output window, operand 0']
    %8 = vsyncpa [#allocation3], 0
    %s9 = scalar_lea.sflag [#allocation3], 1
    %10 = vsyncpa %s9, 0
    %11 = vsyncpa [#allocation4], 0
    %s12 = scalar_lea.sflag [#allocation4], 1
    %13 = vsyncpa %s12, 0
    loop: start=0, step=1, limit=4
    $region2: #{tpu_custom_call.1} parent=1 // loop_pre_header
      _
    $region3: #{tpu_custom_call.1} parent=1 // loop_header
      %s15 = sphi 0, %s19
      %p16 = scmp.ge.s32.totalorder %s15, 4
      %s25 = sphi 0, %s27
      %s28 = sphi 0, %s25
      %s29 = sphi 0, %s28
      %s45 = sphi 0, %s29
      %s49 = sphi 0, %s49
      %s51 = sphi 0, %s49
      %s52 = sphi 0, %s51
      %s66 = sphi 0, %s52
      %s70 = sphi 0, %s70
      %s72 = sphi 0, %s70
      %s73 = sphi 0, %s72
      %s87 = sphi 0, %s73
      %s93 = sphi 0, %s95
      %s96 = sphi 0, %s93
      %s97 = sphi 0, %s96
      %s113 = sphi 0, %s97
    $region4: #{tpu_custom_call.1} parent=1 // loop_header_branch
      %18 = sbr.rel (%p16) target = $region8
    $region5: #{tpu_custom_call.1} parent=1 // loop_body
      %s20 = ssub.s32 %s15, 1
      %s21 = ssub.s32 %s15, 2
      %s22 = sadd.s32 %s15, 1
      %s23 = ssub.s32 %s15, %s22
      %p24 = scmp.eq.s32.totalorder %s23, 0
      %s26 = sadd.s32 %s25, 1
      %s27 = scalar_select %p24, %s25, %s26
      %p30 = pneg %p24
      %p31 = scmp.eq.s32.totalorder %s15, 1
      %p32 = por %p30, %p31
      %p33 = scmp.ne.s32.totalorder %s25, %s28
      %p34 = scmp.eq.s32.totalorder %s15, 0
      %p35 = por %p33, %p34
      %p36 = scmp.ne.s32.totalorder %s25, %s28
      %p37 = scmp.eq.s32.totalorder %s20, 1
      %p38 = por %p36, %p37
      %p39 = scmp.ne.s32.totalorder %s28, %s29
      %p40 = scmp.eq.s32.totalorder %s20, 0
      %p41 = por %p39, %p40
      %p42 = scmp.ne.s32.totalorder %s28, %s29
      %p43 = scmp.eq.s32.totalorder %s21, 1
      %p44 = por %p42, %p43
      %p46 = scmp.ne.s32.totalorder %s29, %s45
      %p47 = scmp.eq.s32.totalorder %s21, 0
      %p48 = por %p46, %p47
      %s50 = sadd.s32 %s49, 1
      %p53 = scmp.eq.s32.totalorder %s15, 1
      %p54 = scmp.ne.s32.totalorder %s49, %s51
      %p55 = scmp.eq.s32.totalorder %s15, 0
      %p56 = por %p54, %p55
      %p57 = scmp.ne.s32.totalorder %s49, %s51
      %p58 = scmp.eq.s32.totalorder %s20, 1
      %p59 = por %p57, %p58
      %p60 = scmp.ne.s32.totalorder %s51, %s52
      %p61 = scmp.eq.s32.totalorder %s20, 0
      %p62 = por %p60, %p61
      %p63 = scmp.ne.s32.totalorder %s51, %s52
      %p64 = scmp.eq.s32.totalorder %s21, 1
      %p65 = por %p63, %p64
      %p67 = scmp.ne.s32.totalorder %s52, %s66
      %p68 = scmp.eq.s32.totalorder %s21, 0
      %p69 = por %p67, %p68
      %s71 = sadd.s32 %s70, 1
      %p74 = scmp.eq.s32.totalorder %s15, 1
      %p75 = scmp.ne.s32.totalorder %s70, %s72
      %p76 = scmp.eq.s32.totalorder %s15, 0
      %p77 = por %p75, %p76
      %p78 = scmp.ne.s32.totalorder %s70, %s72
      %p79 = scmp.eq.s32.totalorder %s20, 1
      %p80 = por %p78, %p79
      %p81 = scmp.ne.s32.totalorder %s72, %s73
      %p82 = scmp.eq.s32.totalorder %s20, 0
      %p83 = por %p81, %p82
      %p84 = scmp.ne.s32.totalorder %s72, %s73
      %p85 = scmp.eq.s32.totalorder %s21, 1
      %p86 = por %p84, %p85
      %p88 = scmp.ne.s32.totalorder %s73, %s87
      %p89 = scmp.eq.s32.totalorder %s21, 0
      %p90 = por %p88, %p89
      %s91 = ssub.s32 %s15, %s22
      %p92 = scmp.eq.s32.totalorder %s91, 0
      %s94 = sadd.s32 %s93, 1
      %s95 = scalar_select %p92, %s93, %s94
      %p98 = pneg %p92
      %p99 = scmp.eq.s32.totalorder %s15, 1
      %p100 = por %p98, %p99
      %p101 = scmp.ne.s32.totalorder %s93, %s96
      %p102 = scmp.eq.s32.totalorder %s15, 0
      %p103 = por %p101, %p102
      %p104 = scmp.ne.s32.totalorder %s93, %s96
      %p105 = scmp.eq.s32.totalorder %s20, 1
      %p106 = por %p104, %p105
      %p107 = scmp.ne.s32.totalorder %s96, %s97
      %p108 = scmp.eq.s32.totalorder %s20, 0
      %p109 = por %p107, %p108
      %p110 = scmp.ne.s32.totalorder %s96, %s97
      %p111 = scmp.eq.s32.totalorder %s21, 1
      %p112 = por %p110, %p111
      %p114 = scmp.ne.s32.totalorder %s97, %s113
      %p115 = scmp.eq.s32.totalorder %s21, 0
      %p116 = por %p114, %p115
      %p117 = scmp.le.s32.totalorder 1, %s15
      %p118 = scmp.lt.s32.totalorder %s15, 3
      %p119 = pnand %p117, %p118
      %p120 = pneg %p119
      // Predicated region
      $region9: #{tpu_custom_call.1} parent=5 // pred_check
        _
      $region10: #{tpu_custom_call.1} parent=5 // pred_check_branch
        %122 = sbr.rel (%p119) target = $region12
      $region11: #{tpu_custom_call.1} parent=5 // pred_region
        %s123 = ssub.s32 %s15, 1
        // Predicated region
        $region13: #{tpu_custom_call.1} parent=11 // pred_check
          %p124 = pneg %p62
        $region14: #{tpu_custom_call.1} parent=11 // pred_check_branch
          %126 = sbr.rel (%p124) target = $region16
        $region15: #{tpu_custom_call.1} parent=11 // pred_region
          _
        $region16: #{tpu_custom_call.1} parent=11 // pred_fallthru
          _
        // Predicated region
        $region17: #{tpu_custom_call.1} parent=11 // pred_check
          %p127 = pneg %p83
        $region18: #{tpu_custom_call.1} parent=11 // pred_check_branch
          %129 = sbr.rel (%p127) target = $region20
        $region19: #{tpu_custom_call.1} parent=11 // pred_region
          _
        $region20: #{tpu_custom_call.1} parent=11 // pred_fallthru
          _
      $region12: #{tpu_custom_call.1} parent=5 // pred_fallthru
        _
      %p130 = scmp.lt.s32.totalorder %s15, 2
      // Predicated region
      $region21: #{tpu_custom_call.1} parent=5 // pred_check
        %p131 = pneg %p130
      $region22: #{tpu_custom_call.1} parent=5 // pred_check_branch
        %133 = sbr.rel (%p131) target = $region24
      $region23: #{tpu_custom_call.1} parent=5 // pred_region
        // Predicated region
        $region25: #{tpu_custom_call.1} parent=23 // pred_check
          %p134 = pneg %p35
        $region26: #{tpu_custom_call.1} parent=23 // pred_check_branch
          %136 = sbr.rel (%p134) target = $region28
        $region27: #{tpu_custom_call.1} parent=23 // pred_region
          %s137 = sand.u32 %s25, 1
          %s138 = scalar_lea.sflag [#allocation3], %s137
          %s139 = sand.u32 %s25, 1
          %s140 = smul.addr %s139, 512
          %s141 = scalar_lea.vmem [#allocation2], %s140
          %s143 = ssub.s32 8192, 8192
          %144 = vsyncadd %s138, %s143
          %s145 = smul.addr %s15, 64
          %s146 = smul.addr %s145, 128
          %s147 = scalar_lea.hbm %s0, %s146
          %s148 = sshll.u32 %s141, 4
          %s149 = int_to_ptr.vmem [resolvable:$true] %s148
          %154 = dma.hbm_to_vmem [thread:$0]  %s147, 8192, %s149, %s138, 1024, 1024, 64
        $region28: #{tpu_custom_call.1} parent=23 // pred_fallthru
          _
      $region24: #{tpu_custom_call.1} parent=5 // pred_fallthru
        _
      %p155 = scmp.le.s32.totalorder 1, %s15
      %p156 = scmp.lt.s32.totalorder %s15, 3
      %p157 = pnand %p155, %p156
      %p158 = pneg %p157
      // Predicated region
      $region29: #{tpu_custom_call.1} parent=5 // pred_check
        _
      $region30: #{tpu_custom_call.1} parent=5 // pred_check_branch
        %160 = sbr.rel (%p157) target = $region32
      $region31: #{tpu_custom_call.1} parent=5 // pred_region
        %s161 = ssub.s32 %s15, 1
        %s162 = sand.u32 %s28, 1
        %s163 = scalar_lea.sflag [#allocation3], %s162
        %s164 = sand.u32 %s28, 1
        %s165 = smul.addr %s164, 512
        %s166 = scalar_lea.vmem [#allocation2], %s165
        // Predicated region
        $region33: #{tpu_custom_call.1} parent=31 // pred_check
          %p167 = pneg %p41
        $region34: #{tpu_custom_call.1} parent=31 // pred_check_branch
          %169 = sbr.rel (%p167) target = $region36
        $region35: #{tpu_custom_call.1} parent=31 // pred_region
          %170 = dma.done %s163, 8192
        $region36: #{tpu_custom_call.1} parent=31 // pred_fallthru
          _
        %s171 = sand.u32 %s28, 1
        %s172 = scalar_lea.sflag [#allocation3], %s171
        %s173 = sand.u32 %s28, 1
        %s174 = smul.addr %s173, 512
        %s175 = scalar_lea.vmem [#allocation2], %s174
        %p176 = pneg %p41
        %p177 = pneg %p38
        %p178 = pneg %p62
        %p179 = pneg %p59
        %p180 = pneg %p83
        %p181 = pneg %p80
        %p182 = pneg %p109
        %p183 = pneg %p106
        %s184 = sand.u32 %s96, 1
        %s185 = scalar_lea.sflag [#allocation4], %s184
        %s186 = sand.u32 %s96, 1
        %s187 = smul.addr %s186, 512
        %s188 = scalar_lea.vmem [#allocation5], %s187
        %v189 = vld [vmem:[%s166] sm:$0xff]
        %v190 = vld [vmem:[%s166 + $0x8] sm:$0xff]
        %v191 = vld [vmem:[%s166 + $0x10] sm:$0xff]
        %v192 = vld [vmem:[%s166 + $0x18] sm:$0xff]
        %v193 = vld [vmem:[%s166 + $0x20] sm:$0xff]
        %v194 = vld [vmem:[%s166 + $0x28] sm:$0xff]
        %v195 = vld [vmem:[%s166 + $0x30] sm:$0xff]
        %v196 = vld [vmem:[%s166 + $0x38] sm:$0xff]
        %v197 = vld [vmem:[%s166 + $0x40] sm:$0xff]
        %v198 = vld [vmem:[%s166 + $0x48] sm:$0xff]
        %v199 = vld [vmem:[%s166 + $0x50] sm:$0xff]
        %v200 = vld [vmem:[%s166 + $0x58] sm:$0xff]
        %v201 = vld [vmem:[%s166 + $0x60] sm:$0xff]
        %v202 = vld [vmem:[%s166 + $0x68] sm:$0xff]
        %v203 = vld [vmem:[%s166 + $0x70] sm:$0xff]
        %v204 = vld [vmem:[%s166 + $0x78] sm:$0xff]
        %v205 = vld [vmem:[%s166 + $0x80] sm:$0xff]
        %v206 = vld [vmem:[%s166 + $0x88] sm:$0xff]
        %v207 = vld [vmem:[%s166 + $0x90] sm:$0xff]
        %v208 = vld [vmem:[%s166 + $0x98] sm:$0xff]
        %v209 = vld [vmem:[%s166 + $0xa0] sm:$0xff]
        %v210 = vld [vmem:[%s166 + $0xa8] sm:$0xff]
        %v211 = vld [vmem:[%s166 + $0xb0] sm:$0xff]
        %v212 = vld [vmem:[%s166 + $0xb8] sm:$0xff]
        %v213 = vld [vmem:[%s166 + $0xc0] sm:$0xff]
        %v214 = vld [vmem:[%s166 + $0xc8] sm:$0xff]
        %v215 = vld [vmem:[%s166 + $0xd0] sm:$0xff]
        %v216 = vld [vmem:[%s166 + $0xd8] sm:$0xff]
        %v217 = vld [vmem:[%s166 + $0xe0] sm:$0xff]
        %v218 = vld [vmem:[%s166 + $0xe8] sm:$0xff]
        %v219 = vld [vmem:[%s166 + $0xf0] sm:$0xff]
        %v220 = vld [vmem:[%s166 + $0xf8] sm:$0xff]
        %v221 = vld [vmem:[%s166 + $0x100] sm:$0xff]
        %v222 = vld [vmem:[%s166 + $0x108] sm:$0xff]
        %v223 = vld [vmem:[%s166 + $0x110] sm:$0xff]
        %v224 = vld [vmem:[%s166 + $0x118] sm:$0xff]
        %v225 = vld [vmem:[%s166 + $0x120] sm:$0xff]
        %v226 = vld [vmem:[%s166 + $0x128] sm:$0xff]
        %v227 = vld [vmem:[%s166 + $0x130] sm:$0xff]
        %v228 = vld [vmem:[%s166 + $0x138] sm:$0xff]
        %v229 = vld [vmem:[%s166 + $0x140] sm:$0xff]
        %v230 = vld [vmem:[%s166 + $0x148] sm:$0xff]
        %v231 = vld [vmem:[%s166 + $0x150] sm:$0xff]
        %v232 = vld [vmem:[%s166 + $0x158] sm:$0xff]
        %v233 = vld [vmem:[%s166 + $0x160] sm:$0xff]
        %v234 = vld [vmem:[%s166 + $0x168] sm:$0xff]
        %v235 = vld [vmem:[%s166 + $0x170] sm:$0xff]
        %v236 = vld [vmem:[%s166 + $0x178] sm:$0xff]
        %v237 = vld [vmem:[%s166 + $0x180] sm:$0xff]
        %v238 = vld [vmem:[%s166 + $0x188] sm:$0xff]
        %v239 = vld [vmem:[%s166 + $0x190] sm:$0xff]
        %v240 = vld [vmem:[%s166 + $0x198] sm:$0xff]
        %v241 = vld [vmem:[%s166 + $0x1a0] sm:$0xff]
        %v242 = vld [vmem:[%s166 + $0x1a8] sm:$0xff]
        %v243 = vld [vmem:[%s166 + $0x1b0] sm:$0xff]
        %v244 = vld [vmem:[%s166 + $0x1b8] sm:$0xff]
        %v245 = vld [vmem:[%s166 + $0x1c0] sm:$0xff]
        %v246 = vld [vmem:[%s166 + $0x1c8] sm:$0xff]
        %v247 = vld [vmem:[%s166 + $0x1d0] sm:$0xff]
        %v248 = vld [vmem:[%s166 + $0x1d8] sm:$0xff]
        %v249 = vld [vmem:[%s166 + $0x1e0] sm:$0xff]
        %v250 = vld [vmem:[%s166 + $0x1e8] sm:$0xff]
        %v251 = vld [vmem:[%s166 + $0x1f0] sm:$0xff]
        %v252 = vld [vmem:[%s166 + $0x1f8] sm:$0xff]
        %v253 = vadd.f32 %v189, %v190
        %v254 = vadd.f32 %v253, %v191
        %v255 = vadd.f32 %v254, %v192
        %v256 = vadd.f32 %v255, %v193
        %v257 = vadd.f32 %v256, %v194
        %v258 = vadd.f32 %v257, %v195
        %v259 = vadd.f32 %v258, %v196
        %260 = vadd.xlane.f32.xlu0 %v259
        %v261 = vpop.xlane.xlu0 %260
        %v262 = vadd.f32 %v197, %v198
        %v263 = vadd.f32 %v262, %v199
        %v264 = vadd.f32 %v263, %v200
        %v265 = vadd.f32 %v264, %v201
        %v266 = vadd.f32 %v265, %v202
        %v267 = vadd.f32 %v266, %v203
        %v268 = vadd.f32 %v267, %v204
        %269 = vadd.xlane.f32.xlu0 %v268
        %v270 = vpop.xlane.xlu0 %269
        %v271 = vadd.f32 %v205, %v206
        %v272 = vadd.f32 %v271, %v207
        %v273 = vadd.f32 %v272, %v208
        %v274 = vadd.f32 %v273, %v209
        %v275 = vadd.f32 %v274, %v210
        %v276 = vadd.f32 %v275, %v211
        %v277 = vadd.f32 %v276, %v212
        %278 = vadd.xlane.f32.xlu0 %v277
        %v279 = vpop.xlane.xlu0 %278
        %v280 = vadd.f32 %v213, %v214
        %v281 = vadd.f32 %v280, %v215
        %v282 = vadd.f32 %v281, %v216
        %v283 = vadd.f32 %v282, %v217
        %v284 = vadd.f32 %v283, %v218
        %v285 = vadd.f32 %v284, %v219
        %v286 = vadd.f32 %v285, %v220
        %287 = vadd.xlane.f32.xlu0 %v286
        %v288 = vpop.xlane.xlu0 %287
        %v289 = vadd.f32 %v221, %v222
        %v290 = vadd.f32 %v289, %v223
        %v291 = vadd.f32 %v290, %v224
        %v292 = vadd.f32 %v291, %v225
        %v293 = vadd.f32 %v292, %v226
        %v294 = vadd.f32 %v293, %v227
        %v295 = vadd.f32 %v294, %v228
        %296 = vadd.xlane.f32.xlu0 %v295
        %v297 = vpop.xlane.xlu0 %296
        %v298 = vadd.f32 %v229, %v230
        %v299 = vadd.f32 %v298, %v231
        %v300 = vadd.f32 %v299, %v232
        %v301 = vadd.f32 %v300, %v233
        %v302 = vadd.f32 %v301, %v234
        %v303 = vadd.f32 %v302, %v235
        %v304 = vadd.f32 %v303, %v236
        %305 = vadd.xlane.f32.xlu0 %v304
        %v306 = vpop.xlane.xlu0 %305
        %v307 = vadd.f32 %v237, %v238
        %v308 = vadd.f32 %v307, %v239
        %v309 = vadd.f32 %v308, %v240
        %v310 = vadd.f32 %v309, %v241
        %v311 = vadd.f32 %v310, %v242
        %v312 = vadd.f32 %v311, %v243
        %v313 = vadd.f32 %v312, %v244
        %314 = vadd.xlane.f32.xlu0 %v313
        %v315 = vpop.xlane.xlu0 %314
        %v316 = vadd.f32 %v245, %v246
        %v317 = vadd.f32 %v316, %v247
        %v318 = vadd.f32 %v317, %v248
        %v319 = vadd.f32 %v318, %v249
        %v320 = vadd.f32 %v319, %v250
        %v321 = vadd.f32 %v320, %v251
        %v322 = vadd.f32 %v321, %v252
        %323 = vadd.xlane.f32.xlu0 %v322
        %v324 = vpop.xlane.xlu0 %323
        %v325 = vmul.f32 %v261, 0.0009765625
        %v326 = vmul.f32 %v270, 0.0009765625
        %v327 = vmul.f32 %v279, 0.0009765625
        %v328 = vmul.f32 %v288, 0.0009765625
        %v329 = vmul.f32 %v297, 0.0009765625
        %v330 = vmul.f32 %v306, 0.0009765625
        %v331 = vmul.f32 %v315, 0.0009765625
        %v332 = vmul.f32 %v324, 0.0009765625
        %v333 = vld [vmem:[%s1] sm:$0xff]
        %v334 = vld [vmem:[%s1 + $0x8] sm:$0xff]
        %v335 = vld [vmem:[%s1 + $0x10] sm:$0x1f]
        %vm336 = vcmask 523264
        %v338 = vsel %vm336, %v333, 0
        %v341 = vsel %vm336, %v334, 0
        %v344 = vsel %vm336, %v335, 0
        %346 = vmatprep.subr.mxu0 0.0
        %347 = vmatpush1.msra.mxu0 0.0
        %348 = vmatprep.subr.mxu0 0.0
        %349 = vmatpush1.msra.mxu0 0.0
        %350 = vmatprep.subr.mxu0 0.0
        %351 = vmatpush1.msra.mxu0 0.0
        %352 = vmatprep.subr.mxu0 0.0
        %353 = vmatpush1.msra.mxu0 0.0
        %354 = vmatprep.subr.mxu0 0.0
        %355 = vmatpush1.msra.mxu0 0.0
        %356 = vmatprep.subr.mxu0 0.0
        %357 = vmatpush1.msra.mxu0 0.0
        %358 = vmatprep.subr.mxu0 0.0
        %359 = vmatpush1.msra.mxu0 0.0
        %360 = vmatprep.subr.mxu0 0.0
        %361 = vmatpush1.msra.mxu0 0.0
        %362 = vmatprep.subr.mxu0 0.0
        %363 = vmatpush1.msra.mxu0 %v332
        %364 = vmatprep.subr.mxu0 0.0
        %365 = vmatpush1.msra.mxu0 %v331
        %366 = vmatprep.subr.mxu0 0.0
        %367 = vmatpush1.msra.mxu0 %v330
        %368 = vmatprep.subr.mxu0 0.0
        %369 = vmatpush1.msra.mxu0 %v329
        %370 = vmatprep.subr.mxu0 0.0
        %371 = vmatpush1.msra.mxu0 %v328
        %372 = vmatprep.subr.mxu0 0.0
        %373 = vmatpush1.msra.mxu0 %v327
        %374 = vmatprep.subr.mxu0 0.0
        %375 = vmatpush1.msra.mxu0 %v326
        %376 = vmatprep.subr.mxu0 0.0
        %377 = vmatpush1.msra.mxu0 %v325
        %378 = vmatprep.subr.mxu0 0.0
        %379 = vmatpush2.msra.mxu0 0.0
        %380 = vmatprep.subr.mxu0 0.0
        %381 = vmatpush2.msra.mxu0 0.0
        %382 = vmatprep.subr.mxu0 0.0
        %383 = vmatpush2.msra.mxu0 0.0
        %384 = vmatprep.subr.mxu0 0.0
        %385 = vmatpush2.msra.mxu0 0.0
        %386 = vmatprep.subr.mxu0 0.0
        %387 = vmatpush2.msra.mxu0 0.0
        %388 = vmatprep.subr.mxu0 0.0
        %389 = vmatpush2.msra.mxu0 0.0
        %390 = vmatprep.subr.mxu0 0.0
        %391 = vmatpush2.msra.mxu0 0.0
        %392 = vmatprep.subr.mxu0 0.0
        %393 = vmatpush2.msra.mxu0 0.0
        %394 = vmatprep.subr.mxu0 0.0
        %395 = vmatpush2.msra.mxu0 0.0
        %396 = vmatprep.subr.mxu0 0.0
        %397 = vmatpush2.msra.mxu0 0.0
        %398 = vmatprep.subr.mxu0 0.0
        %399 = vmatpush2.msra.mxu0 0.0
        %400 = vmatprep.subr.mxu0 0.0
        %401 = vmatpush2.msra.mxu0 0.0
        %402 = vmatprep.subr.mxu0 0.0
        %403 = vmatpush2.msra.mxu0 0.0
        %404 = vmatprep.subr.mxu0 0.0
        %405 = vmatpush2.msra.mxu0 0.0
        %406 = vmatprep.subr.mxu0 0.0
        %407 = vmatpush2.msra.mxu0 0.0
        %408 = vmatprep.subr.mxu0 0.0
        %409 = vmatpush2.msra.mxu0 0.0
        %410 = vmatprep.mubr.f32.mxu0 0.0
        %411 = vmatmul.mubr.f32.gmra.mxu0 %v338
        %v412 = vpop.f32.mrf.mxu0
        %v413 = vadd.f32 0.0, %v412
        %v414 = vpop.f32.mrf.mxu0
        %415 = vmatprep.mubr.f32.mxu0 0.0
        %416 = vmatmul.mubr.f32.gmra.mxu0 %v341
        %v417 = vpop.f32.mrf.mxu0
        %v418 = vadd.f32 0.0, %v417
        %v419 = vpop.f32.mrf.mxu0
        %420 = vmatprep.mubr.f32.mxu0 0.0
        %421 = vmatmul.mubr.f32.gmra.mxu0 %v344
        %v422 = vpop.f32.mrf.mxu0
        %v423 = vadd.f32 0.0, %v422
        %v424 = vpop.f32.mrf.mxu0
        %425 = vdwg.mxu0
        %v426 = vmax.f32 %v413, 0.0
        %v427 = vmax.f32 %v418, 0.0
        %v428 = vmax.f32 %v423, 0.0
        %v429 = vld [vmem:[%s2] sm:$0xff]
        %v430 = vld [vmem:[%s2 + $0x8] sm:$0xff]
        %v431 = vld [vmem:[%s2 + $0x10] sm:$0xff]
        %v432 = vld [vmem:[%s2 + $0x18] sm:$0xff]
        %v433 = vld [vmem:[%s2 + $0x20] sm:$0xff]
        %v434 = vld [vmem:[%s2 + $0x28] sm:$0xff]
        %v435 = vld [vmem:[%s2 + $0x30] sm:$0xff]
        %v436 = vld [vmem:[%s2 + $0x38] sm:$0xff]
        %vm437 = vcmask 171008
        %v439 = vsel %vm437, %v429, 0
        %v442 = vsel %vm437, %v430, 0
        %v445 = vsel %vm437, %v431, 0
        %v448 = vsel %vm437, %v432, 0
        %v451 = vsel %vm437, %v433, 0
        %v454 = vsel %vm437, %v434, 0
        %v457 = vsel %vm437, %v435, 0
        %v460 = vsel %vm437, %v436, 0
        %vm462 = vcmask 1044480
        %v464 = vsel %vm462, %v428, 0
        %466 = vmatprep.subr.mxu0 0.0
        %467 = vmatpush1.msra.mxu0 0.0
        %468 = vmatprep.subr.mxu0 0.0
        %469 = vmatpush1.msra.mxu0 0.0
        %470 = vmatprep.subr.mxu0 0.0
        %471 = vmatpush1.msra.mxu0 0.0
        %472 = vmatprep.subr.mxu0 0.0
        %473 = vmatpush1.msra.mxu0 0.0
        %474 = vmatprep.subr.mxu0 0.0
        %475 = vmatpush1.msra.mxu0 0.0
        %476 = vmatprep.subr.mxu0 0.0
        %477 = vmatpush1.msra.mxu0 0.0
        %478 = vmatprep.subr.mxu0 0.0
        %479 = vmatpush1.msra.mxu0 0.0
        %480 = vmatprep.subr.mxu0 0.0
        %481 = vmatpush1.msra.mxu0 0.0
        %482 = vmatprep.subr.mxu0 0.0
        %483 = vmatpush1.msra.mxu0 0.0
        %484 = vmatprep.subr.mxu0 0.0
        %485 = vmatpush1.msra.mxu0 0.0
        %486 = vmatprep.subr.mxu0 0.0
        %487 = vmatpush1.msra.mxu0 0.0
        %488 = vmatprep.subr.mxu0 0.0
        %489 = vmatpush1.msra.mxu0 0.0
        %490 = vmatprep.subr.mxu0 0.0
        %491 = vmatpush1.msra.mxu0 0.0
        %492 = vmatprep.subr.mxu0 0.0
        %493 = vmatpush1.msra.mxu0 %v464
        %494 = vmatprep.subr.mxu0 0.0
        %495 = vmatpush1.msra.mxu0 %v427
        %496 = vmatprep.subr.mxu0 0.0
        %497 = vmatpush1.msra.mxu0 %v426
        %498 = vmatprep.subr.mxu0 0.0
        %499 = vmatpush2.msra.mxu0 0.0
        %500 = vmatprep.subr.mxu0 0.0
        %501 = vmatpush2.msra.mxu0 0.0
        %502 = vmatprep.subr.mxu0 0.0
        %503 = vmatpush2.msra.mxu0 0.0
        %504 = vmatprep.subr.mxu0 0.0
        %505 = vmatpush2.msra.mxu0 0.0
        %506 = vmatprep.subr.mxu0 0.0
        %507 = vmatpush2.msra.mxu0 0.0
        %508 = vmatprep.subr.mxu0 0.0
        %509 = vmatpush2.msra.mxu0 0.0
        %510 = vmatprep.subr.mxu0 0.0
        %511 = vmatpush2.msra.mxu0 0.0
        %512 = vmatprep.subr.mxu0 0.0
        %513 = vmatpush2.msra.mxu0 0.0
        %514 = vmatprep.subr.mxu0 0.0
        %515 = vmatpush2.msra.mxu0 0.0
        %516 = vmatprep.subr.mxu0 0.0
        %517 = vmatpush2.msra.mxu0 0.0
        %518 = vmatprep.subr.mxu0 0.0
        %519 = vmatpush2.msra.mxu0 0.0
        %520 = vmatprep.subr.mxu0 0.0
        %521 = vmatpush2.msra.mxu0 0.0
        %522 = vmatprep.subr.mxu0 0.0
        %523 = vmatpush2.msra.mxu0 0.0
        %524 = vmatprep.subr.mxu0 0.0
        %525 = vmatpush2.msra.mxu0 0.0
        %526 = vmatprep.subr.mxu0 0.0
        %527 = vmatpush2.msra.mxu0 0.0
        %528 = vmatprep.subr.mxu0 0.0
        %529 = vmatpush2.msra.mxu0 0.0
        %530 = vmatprep.mubr.f32.mxu0 0.0
        %531 = vmatmul.mubr.f32.gmra.mxu0 %v439
        %v532 = vpop.f32.mrf.mxu0
        %v533 = vadd.f32 0.0, %v532
        %v534 = vpop.f32.mrf.mxu0
        %535 = vmatprep.mubr.f32.mxu0 0.0
        %536 = vmatmul.mubr.f32.gmra.mxu0 %v442
        %v537 = vpop.f32.mrf.mxu0
        %v538 = vadd.f32 0.0, %v537
        %v539 = vpop.f32.mrf.mxu0
        %540 = vmatprep.mubr.f32.mxu0 0.0
        %541 = vmatmul.mubr.f32.gmra.mxu0 %v445
        %v542 = vpop.f32.mrf.mxu0
        %v543 = vadd.f32 0.0, %v542
        %v544 = vpop.f32.mrf.mxu0
        %545 = vmatprep.mubr.f32.mxu0 0.0
        %546 = vmatmul.mubr.f32.gmra.mxu0 %v448
        %v547 = vpop.f32.mrf.mxu0
        %v548 = vadd.f32 0.0, %v547
        %v549 = vpop.f32.mrf.mxu0
        %550 = vmatprep.mubr.f32.mxu0 0.0
        %551 = vmatmul.mubr.f32.gmra.mxu0 %v451
        %v552 = vpop.f32.mrf.mxu0
        %v553 = vadd.f32 0.0, %v552
        %v554 = vpop.f32.mrf.mxu0
        %555 = vmatprep.mubr.f32.mxu0 0.0
        %556 = vmatmul.mubr.f32.gmra.mxu0 %v454
        %v557 = vpop.f32.mrf.mxu0
        %v558 = vadd.f32 0.0, %v557
        %v559 = vpop.f32.mrf.mxu0
        %560 = vmatprep.mubr.f32.mxu0 0.0
        %561 = vmatmul.mubr.f32.gmra.mxu0 %v457
        %v562 = vpop.f32.mrf.mxu0
        %v563 = vadd.f32 0.0, %v562
        %v564 = vpop.f32.mrf.mxu0
        %565 = vmatprep.mubr.f32.mxu0 0.0
        %566 = vmatmul.mubr.f32.gmra.mxu0 %v460
        %v567 = vpop.f32.mrf.mxu0
        %v568 = vadd.f32 0.0, %v567
        %v569 = vpop.f32.mrf.mxu0
        %570 = vdwg.mxu0
        %v571 = vxor.u32 %v533, 2147483648
        %v572 = vxor.u32 %v538, 2147483648
        %v573 = vxor.u32 %v543, 2147483648
        %v574 = vxor.u32 %v548, 2147483648
        %v575 = vxor.u32 %v553, 2147483648
        %v576 = vxor.u32 %v558, 2147483648
        %v577 = vxor.u32 %v563, 2147483648
        %v578 = vxor.u32 %v568, 2147483648
        %v579 = vmul.f32 %v571, 1.442695
        %v580 = vpow.pop %v579
        %v581 = vmul.f32 %v572, 1.442695
        %v582 = vpow.pop %v581
        %v583 = vmul.f32 %v573, 1.442695
        %v584 = vpow.pop %v583
        %v585 = vmul.f32 %v574, 1.442695
        %v586 = vpow.pop %v585
        %v587 = vmul.f32 %v575, 1.442695
        %v588 = vpow.pop %v587
        %v589 = vmul.f32 %v576, 1.442695
        %v590 = vpow.pop %v589
        %v591 = vmul.f32 %v577, 1.442695
        %v592 = vpow.pop %v591
        %v593 = vmul.f32 %v578, 1.442695
        %v594 = vpow.pop %v593
        %v595 = vadd.f32 %v580, 1.0
        %v596 = vadd.f32 %v582, 1.0
        %v597 = vadd.f32 %v584, 1.0
        %v598 = vadd.f32 %v586, 1.0
        %v599 = vadd.f32 %v588, 1.0
        %v600 = vadd.f32 %v590, 1.0
        %v601 = vadd.f32 %v592, 1.0
        %v602 = vadd.f32 %v594, 1.0
        %v603 = vrcp.pop %v595
        %v604 = vmul.f32 1.0, %v603
        %v605 = vrcp.pop %v596
        %v606 = vmul.f32 1.0, %v605
        %v607 = vrcp.pop %v597
        %v608 = vmul.f32 1.0, %v607
        %v609 = vrcp.pop %v598
        %v610 = vmul.f32 1.0, %v609
        %v611 = vrcp.pop %v599
        %v612 = vmul.f32 1.0, %v611
        %v613 = vrcp.pop %v600
        %v614 = vmul.f32 1.0, %v613
        %v615 = vrcp.pop %v601
        %v616 = vmul.f32 1.0, %v615
        %v617 = vrcp.pop %v602
        %v618 = vmul.f32 1.0, %v617
        %620 = vset.pattern.permute.xlu0 0
        %621 = vperm.xlu0 %620, %v604
        %v622 = vpop.permute.xlu0 %621
        %625 = vset.pattern.permute.xlu0 0
        %626 = vperm.xlu0 %625, %v606
        %v627 = vpop.permute.xlu0 %626
        %630 = vset.pattern.permute.xlu0 0
        %631 = vperm.xlu0 %630, %v608
        %v632 = vpop.permute.xlu0 %631
        %635 = vset.pattern.permute.xlu0 0
        %636 = vperm.xlu0 %635, %v610
        %v637 = vpop.permute.xlu0 %636
        %640 = vset.pattern.permute.xlu0 0
        %641 = vperm.xlu0 %640, %v612
        %v642 = vpop.permute.xlu0 %641
        %645 = vset.pattern.permute.xlu0 0
        %646 = vperm.xlu0 %645, %v614
        %v647 = vpop.permute.xlu0 %646
        %650 = vset.pattern.permute.xlu0 0
        %651 = vperm.xlu0 %650, %v616
        %v652 = vpop.permute.xlu0 %651
        %655 = vset.pattern.permute.xlu0 0
        %656 = vperm.xlu0 %655, %v618
        %v657 = vpop.permute.xlu0 %656
        %v659 = vmul.f32 %v189, %v622
        %v660 = vmul.f32 %v190, %v622
        %v661 = vmul.f32 %v191, %v622
        %v662 = vmul.f32 %v192, %v622
        %v663 = vmul.f32 %v193, %v622
        %v664 = vmul.f32 %v194, %v622
        %v665 = vmul.f32 %v195, %v622
        %v666 = vmul.f32 %v196, %v622
        %v667 = vmul.f32 %v197, %v627
        %v668 = vmul.f32 %v198, %v627
        %v669 = vmul.f32 %v199, %v627
        %v670 = vmul.f32 %v200, %v627
        %v671 = vmul.f32 %v201, %v627
        %v672 = vmul.f32 %v202, %v627
        %v673 = vmul.f32 %v203, %v627
        %v674 = vmul.f32 %v204, %v627
        %v675 = vmul.f32 %v205, %v632
        %v676 = vmul.f32 %v206, %v632
        %v677 = vmul.f32 %v207, %v632
        %v678 = vmul.f32 %v208, %v632
        %v679 = vmul.f32 %v209, %v632
        %v680 = vmul.f32 %v210, %v632
        %v681 = vmul.f32 %v211, %v632
        %v682 = vmul.f32 %v212, %v632
        %v683 = vmul.f32 %v213, %v637
        %v684 = vmul.f32 %v214, %v637
        %v685 = vmul.f32 %v215, %v637
        %v686 = vmul.f32 %v216, %v637
        %v687 = vmul.f32 %v217, %v637
        %v688 = vmul.f32 %v218, %v637
        %v689 = vmul.f32 %v219, %v637
        %v690 = vmul.f32 %v220, %v637
        %v691 = vmul.f32 %v221, %v642
        %v692 = vmul.f32 %v222, %v642
        %v693 = vmul.f32 %v223, %v642
        %v694 = vmul.f32 %v224, %v642
        %v695 = vmul.f32 %v225, %v642
        %v696 = vmul.f32 %v226, %v642
        %v697 = vmul.f32 %v227, %v642
        %v698 = vmul.f32 %v228, %v642
        %v699 = vmul.f32 %v229, %v647
        %v700 = vmul.f32 %v230, %v647
        %v701 = vmul.f32 %v231, %v647
        %v702 = vmul.f32 %v232, %v647
        %v703 = vmul.f32 %v233, %v647
        %v704 = vmul.f32 %v234, %v647
        %v705 = vmul.f32 %v235, %v647
        %v706 = vmul.f32 %v236, %v647
        %v707 = vmul.f32 %v237, %v652
        %v708 = vmul.f32 %v238, %v652
        %v709 = vmul.f32 %v239, %v652
        %v710 = vmul.f32 %v240, %v652
        %v711 = vmul.f32 %v241, %v652
        %v712 = vmul.f32 %v242, %v652
        %v713 = vmul.f32 %v243, %v652
        %v714 = vmul.f32 %v244, %v652
        %v715 = vmul.f32 %v245, %v657
        %v716 = vmul.f32 %v246, %v657
        %v717 = vmul.f32 %v247, %v657
        %v718 = vmul.f32 %v248, %v657
        %v719 = vmul.f32 %v249, %v657
        %v720 = vmul.f32 %v250, %v657
        %v721 = vmul.f32 %v251, %v657
        %v722 = vmul.f32 %v252, %v657
        %723 = vst [vmem:[%s188] sm:$0xff] %v659
        %724 = vst [vmem:[%s188 + $0x8] sm:$0xff] %v660
        %725 = vst [vmem:[%s188 + $0x10] sm:$0xff] %v661
        %726 = vst [vmem:[%s188 + $0x18] sm:$0xff] %v662
        %727 = vst [vmem:[%s188 + $0x20] sm:$0xff] %v663
        %728 = vst [vmem:[%s188 + $0x28] sm:$0xff] %v664
        %729 = vst [vmem:[%s188 + $0x30] sm:$0xff] %v665
        %730 = vst [vmem:[%s188 + $0x38] sm:$0xff] %v666
        %731 = vst [vmem:[%s188 + $0x40] sm:$0xff] %v667
        %732 = vst [vmem:[%s188 + $0x48] sm:$0xff] %v668
        %733 = vst [vmem:[%s188 + $0x50] sm:$0xff] %v669
        %734 = vst [vmem:[%s188 + $0x58] sm:$0xff] %v670
        %735 = vst [vmem:[%s188 + $0x60] sm:$0xff] %v671
        %736 = vst [vmem:[%s188 + $0x68] sm:$0xff] %v672
        %737 = vst [vmem:[%s188 + $0x70] sm:$0xff] %v673
        %738 = vst [vmem:[%s188 + $0x78] sm:$0xff] %v674
        %739 = vst [vmem:[%s188 + $0x80] sm:$0xff] %v675
        %740 = vst [vmem:[%s188 + $0x88] sm:$0xff] %v676
        %741 = vst [vmem:[%s188 + $0x90] sm:$0xff] %v677
        %742 = vst [vmem:[%s188 + $0x98] sm:$0xff] %v678
        %743 = vst [vmem:[%s188 + $0xa0] sm:$0xff] %v679
        %744 = vst [vmem:[%s188 + $0xa8] sm:$0xff] %v680
        %745 = vst [vmem:[%s188 + $0xb0] sm:$0xff] %v681
        %746 = vst [vmem:[%s188 + $0xb8] sm:$0xff] %v682
        %747 = vst [vmem:[%s188 + $0xc0] sm:$0xff] %v683
        %748 = vst [vmem:[%s188 + $0xc8] sm:$0xff] %v684
        %749 = vst [vmem:[%s188 + $0xd0] sm:$0xff] %v685
        %750 = vst [vmem:[%s188 + $0xd8] sm:$0xff] %v686
        %751 = vst [vmem:[%s188 + $0xe0] sm:$0xff] %v687
        %752 = vst [vmem:[%s188 + $0xe8] sm:$0xff] %v688
        %753 = vst [vmem:[%s188 + $0xf0] sm:$0xff] %v689
        %754 = vst [vmem:[%s188 + $0xf8] sm:$0xff] %v690
        %755 = vst [vmem:[%s188 + $0x100] sm:$0xff] %v691
        %756 = vst [vmem:[%s188 + $0x108] sm:$0xff] %v692
        %757 = vst [vmem:[%s188 + $0x110] sm:$0xff] %v693
        %758 = vst [vmem:[%s188 + $0x118] sm:$0xff] %v694
        %759 = vst [vmem:[%s188 + $0x120] sm:$0xff] %v695
        %760 = vst [vmem:[%s188 + $0x128] sm:$0xff] %v696
        %761 = vst [vmem:[%s188 + $0x130] sm:$0xff] %v697
        %762 = vst [vmem:[%s188 + $0x138] sm:$0xff] %v698
        %763 = vst [vmem:[%s188 + $0x140] sm:$0xff] %v699
        %764 = vst [vmem:[%s188 + $0x148] sm:$0xff] %v700
        %765 = vst [vmem:[%s188 + $0x150] sm:$0xff] %v701
        %766 = vst [vmem:[%s188 + $0x158] sm:$0xff] %v702
        %767 = vst [vmem:[%s188 + $0x160] sm:$0xff] %v703
        %768 = vst [vmem:[%s188 + $0x168] sm:$0xff] %v704
        %769 = vst [vmem:[%s188 + $0x170] sm:$0xff] %v705
        %770 = vst [vmem:[%s188 + $0x178] sm:$0xff] %v706
        %771 = vst [vmem:[%s188 + $0x180] sm:$0xff] %v707
        %772 = vst [vmem:[%s188 + $0x188] sm:$0xff] %v708
        %773 = vst [vmem:[%s188 + $0x190] sm:$0xff] %v709
        %774 = vst [vmem:[%s188 + $0x198] sm:$0xff] %v710
        %775 = vst [vmem:[%s188 + $0x1a0] sm:$0xff] %v711
        %776 = vst [vmem:[%s188 + $0x1a8] sm:$0xff] %v712
        %777 = vst [vmem:[%s188 + $0x1b0] sm:$0xff] %v713
        %778 = vst [vmem:[%s188 + $0x1b8] sm:$0xff] %v714
        %779 = vst [vmem:[%s188 + $0x1c0] sm:$0xff] %v715
        %780 = vst [vmem:[%s188 + $0x1c8] sm:$0xff] %v716
        %781 = vst [vmem:[%s188 + $0x1d0] sm:$0xff] %v717
        %782 = vst [vmem:[%s188 + $0x1d8] sm:$0xff] %v718
        %783 = vst [vmem:[%s188 + $0x1e0] sm:$0xff] %v719
        %784 = vst [vmem:[%s188 + $0x1e8] sm:$0xff] %v720
        %785 = vst [vmem:[%s188 + $0x1f0] sm:$0xff] %v721
        %786 = vst [vmem:[%s188 + $0x1f8] sm:$0xff] %v722
        %s787 = sand.u32 %s96, 1
        %s788 = scalar_lea.sflag [#allocation4], %s787
        %s789 = sand.u32 %s96, 1
        %s790 = smul.addr %s789, 512
        %s791 = scalar_lea.vmem [#allocation5], %s790
        // Predicated region
        $region37: #{tpu_custom_call.1} parent=31 // pred_check
          %p792 = pneg %p106
        $region38: #{tpu_custom_call.1} parent=31 // pred_check_branch
          %794 = sbr.rel (%p792) target = $region40
        $region39: #{tpu_custom_call.1} parent=31 // pred_region
          %s796 = ssub.s32 8192, 8192
          %797 = vsyncadd %s788, %s796
          %s798 = smul.addr %s20, 64
          %s799 = smul.addr %s798, 128
          %s800 = scalar_lea.hbm %s3, %s799
          %s801 = sshll.u32 %s791, 4
          %s802 = int_to_ptr.vmem [resolvable:$true] %s801
          %807 = dma.vmem_to_hbm [thread:$0]  %s802, 8192, %s800, %s788, 1024, 1024, 64
        $region40: #{tpu_custom_call.1} parent=31 // pred_fallthru
          _
      $region32: #{tpu_custom_call.1} parent=5 // pred_fallthru
        _
      %p808 = scmp.le.s32.totalorder 2, %s15
      // Predicated region
      $region41: #{tpu_custom_call.1} parent=5 // pred_check
        %p809 = pneg %p808
      $region42: #{tpu_custom_call.1} parent=5 // pred_check_branch
        %811 = sbr.rel (%p809) target = $region44
      $region43: #{tpu_custom_call.1} parent=5 // pred_region
        %s812 = ssub.s32 %s15, 2
        // Predicated region
        $region45: #{tpu_custom_call.1} parent=43 // pred_check
          %p813 = pneg %p112
        $region46: #{tpu_custom_call.1} parent=43 // pred_check_branch
          %815 = sbr.rel (%p813) target = $region48
        $region47: #{tpu_custom_call.1} parent=43 // pred_region
          %s816 = sand.u32 %s97, 1
          %s817 = scalar_lea.sflag [#allocation4], %s816
          %s818 = sand.u32 %s97, 1
          %s819 = smul.addr %s818, 512
          %s820 = scalar_lea.vmem [#allocation5], %s819
          %821 = dma.done %s817, 8192
        $region48: #{tpu_custom_call.1} parent=43 // pred_fallthru
          _
      $region44: #{tpu_custom_call.1} parent=5 // pred_fallthru
        _
    $region6: #{tpu_custom_call.1} parent=1 // loop_footer
      %s19 = sadd.s32 1, %s15
    $region7: #{tpu_custom_call.1} parent=1 // loop_footer_branch
      %14 = sbr.rel target = $region3
    $region8: #{tpu_custom_call.1} parent=1 // loop_exit
      _
    %822 = vsyncpa [#allocation3], 1
    %s823 = scalar_lea.sflag [#allocation3], 1
    %824 = vsyncpa %s823, 1
    %825 = vsyncpa [#allocation4], 1
    %s826 = scalar_lea.sflag [#allocation4], 1
    %827 = vsyncpa %s826, 1

</llo_original>
